<compile_context>
chip_gen: v5e
topology: v5e:2x2
jax: 0.10.0
libtpu: 0.0.40
codegen_flags: <defaults>
</compile_context>

<pallas_src>
import functools

import jax
import jax.numpy as jnp
from jax import lax
from jax.experimental import pallas as pl
from jax.experimental.pallas import tpu as pltpu


# ----------------------------------------------------------------------------
# Kernels
# ----------------------------------------------------------------------------
def _bn_fused_train_kernel(x_ref, gamma_ref, beta_ref, o_ref, *, eps, inv_n):
    """Whole-array training BN: exact batch stats + normalize, one HBM read of x."""
    x = x_ref[...].astype(jnp.float32)                        # (B, C, HW)
    mean = jnp.sum(x, axis=(0, 2), keepdims=True) * inv_n     # (1, C, 1)
    xc = x - mean
    var = jnp.sum(xc * xc, axis=(0, 2), keepdims=True) * inv_n
    scale = gamma_ref[...] * lax.rsqrt(var + eps)             # (1, C, 1)
    shift = beta_ref[...] - mean * scale
    o_ref[...] = (x * scale + shift).astype(o_ref.dtype)


def _bn_stats_kernel(x_ref, sum_ref, sq_ref):
    """Accumulate per-channel sum / sum-of-squares across the (B, hw-tile) grid."""
    @pl.when((pl.program_id(1) == 0) & (pl.program_id(2) == 0))
    def _():
        sum_ref[...] = jnp.zeros_like(sum_ref)
        sq_ref[...] = jnp.zeros_like(sq_ref)

    x = x_ref[...].astype(jnp.float32)                        # (Cb, TN) lane-dense
    sum_ref[...] += jnp.sum(x, axis=1, keepdims=True)
    sq_ref[...] += jnp.sum(x * x, axis=1, keepdims=True)


def _bn_apply_stats_kernel(x_ref, sum_ref, sq_ref, gamma_ref, beta_ref, o_ref,
                           *, eps, inv_n):
    """Normalize from raw per-channel sums: scale/shift folded into the kernel."""
    mean = sum_ref[...] * inv_n                               # (Cb, 1)
    var = sq_ref[...] * inv_n - mean * mean                   # biased (PyTorch norm.)
    scale = gamma_ref[...] * lax.rsqrt(var + eps)             # rsqrt -> EUP slot
    shift = beta_ref[...] - mean * scale
    o_ref[...] = (x_ref[...].astype(jnp.float32) * scale + shift).astype(o_ref.dtype)


def _bn_apply_affine_kernel(x_ref, scale_ref, shift_ref, o_ref):
    """Eval mode: y = x*scale + shift with precomputed per-channel scale/shift."""
    o_ref[...] = (x_ref[...].astype(jnp.float32) * scale_ref[...]
                  + shift_ref[...]).astype(o_ref.dtype)


# ----------------------------------------------------------------------------
# Sizing helpers (byte-aware, generation-aware)
# ----------------------------------------------------------------------------
def _vmem_capacity_bytes():
    try:
        return int(pltpu.get_tpu_info().vmem_capacity_bytes)
    except Exception:
        return 64 << 20   # conservative: v7x physical VMEM


def _choose_cb(C):
    """Channel-block size: multiple of 8 dividing C with >=2 blocks if possible
    (lets v7x's second TensorCore join the stats reduction); else full C."""
    if C % 8 != 0:
        return C
    for cb in (64, 32, 16, 8):
        if C % cb == 0 and C // cb >= 2:
            return cb
    return C


def _choose_tile_hw(HW, cb, itemsize, budget_bytes):
    """Largest multiple-of-128 divisor of HW whose double-buffered in+out+f32-temp
    working set (in bytes) stays within the budget."""
    if HW % 128 != 0:
        return HW                     # full-extent fallback (see TODO above)
    # per lane: 2x in buf + 2x out buf (native dtype) + ~2 f32 temps, x cb rows
    per_lane_bytes = cb * (4 * itemsize + 8)
    cap = max(128, budget_bytes // per_lane_bytes)
    cap = (cap // 128) * 128
    if cap >= HW:
        return HW
    best = 128
    t = 128
    while t <= cap:
        if HW % t == 0:
            best = t
        t += 128
    return best


# ----------------------------------------------------------------------------
# Wrapper
# ----------------------------------------------------------------------------
def batchnorm2d_forward(x_nchw, gamma, beta, running_mean=None, running_var=None,
                        *, eps=1e-5, training=True,
                        vmem_budget_bytes=None, force_two_pass=False):
    """PyTorch nn.BatchNorm2d forward on a (B, C, H, W) tensor."""
    B, C, H, W = x_nchw.shape
    HW = H * W
    N = B * HW                      # reduction size per channel
    total = C * N
    out_dtype = x_nchw.dtype
    in_item = jnp.dtype(x_nchw.dtype).itemsize
    out_item = jnp.dtype(out_dtype).itemsize

    cap = _vmem_capacity_bytes()
    hw_budget = (cap * 3) // 4                       # 25% headroom on physical VMEM
    budget = hw_budget if vmem_budget_bytes is None else int(vmem_budget_bytes)
    vmem_limit = int(min(max(budget, 32 << 20), hw_budget))

    # Free reshape of row-major NCHW: channels on sublanes, H*W lane-dense.
    x3 = x_nchw.reshape(B, C, HW)
    g_f32 = gamma.astype(jnp.float32)
    b_f32 = beta.astype(jnp.float32)

    if training:
        # Fast path: whole tensor resident in VMEM -> single fused kernel,
        # x read from HBM exactly once.  Gate includes f32 temps + buffers.
        fused_bytes = total * (2 * in_item + 2 * out_item + 16)
        if (not force_two_pass) and fused_bytes <= budget:
            kern = functools.partial(_bn_fused_train_kernel,
                                     eps=float(eps), inv_n=1.0 / float(N))
            y3 = pl.pallas_call(
                kern,
                out_shape=jax.ShapeDtypeStruct((B, C, HW), out_dtype),
                grid_spec=pltpu.PrefetchScalarGridSpec(
                    num_scalar_prefetch=0,
                    grid=(1,),
                    in_specs=[pl.BlockSpec((B, C, HW), lambda i: (0, 0, 0)),
                              pl.BlockSpec((1, C, 1), lambda i: (0, 0, 0)),
                              pl.BlockSpec((1, C, 1), lambda i: (0, 0, 0))],
                    out_specs=pl.BlockSpec((B, C, HW), lambda i: (0, 0, 0)),
                ),
                compiler_params=pltpu.CompilerParams(
                    dimension_semantics=("arbitrary",),
                    vmem_limit_bytes=vmem_limit),
                cost_estimate=pl.CostEstimate(
                    flops=7 * total, transcendentals=C,
                    bytes_accessed=total * (in_item + out_item) + 8 * C),
            )(x3, g_f32.reshape(1, C, 1), b_f32.reshape(1, C, 1))
            return y3.reshape(B, C, H, W)

        # Large inputs: two-pass tiled pipeline (x read twice, written once).
        cb = _choose_cb(C)
        n_cb = C // cb
        tn = _choose_tile_hw(HW, cb, in_item, budget)
        n_hw = HW // tn

        # Pass 1: per-channel sum / sumsq, resident (Cb,1) accumulators per
        # channel block; channel-block axis parallel (megacore), rest arbitrary.
        ch_sum, ch_sq = pl.pallas_call(
            _bn_stats_kernel,
            out_shape=(jax.ShapeDtypeStruct((C, 1), jnp.float32),
                       jax.ShapeDtypeStruct((C, 1), jnp.float32)),
            grid_spec=pltpu.PrefetchScalarGridSpec(
                num_scalar_prefetch=0,
                grid=(n_cb, B, n_hw),
                in_specs=[pl.BlockSpec((None, cb, tn), lambda c, b, t: (b, c, t))],
                out_specs=(pl.BlockSpec((cb, 1), lambda c, b, t: (c, 0)),
                           pl.BlockSpec((cb, 1), lambda c, b, t: (c, 0))),
            ),
            compiler_params=pltpu.CompilerParams(
                dimension_semantics=("parallel", "arbitrary", "arbitrary"),
                vmem_limit_bytes=vmem_limit),
            cost_estimate=pl.CostEstimate(
                flops=3 * total, transcendentals=0,
                bytes_accessed=total * in_item + 8 * C),
        )(x3)

        # Pass 2: normalize; scale/shift computed from the raw sums *inside* the
        # kernel (no tiny XLA ops between the two launches).  Fully parallel grid.
        kern = functools.partial(_bn_apply_stats_kernel,
                                 eps=float(eps), inv_n=1.0 / float(N))
        y3 = pl.pallas_call(
            kern,
            out_shape=jax.ShapeDtypeStruct((B, C, HW), out_dtype),
            grid_spec=pltpu.PrefetchScalarGridSpec(
                num_scalar_prefetch=0,
                grid=(n_cb, B, n_hw),
                in_specs=[pl.BlockSpec((None, cb, tn), lambda c, b, t: (b, c, t)),
                          pl.BlockSpec((cb, 1), lambda c, b, t: (c, 0)),
                          pl.BlockSpec((cb, 1), lambda c, b, t: (c, 0)),
                          pl.BlockSpec((cb, 1), lambda c, b, t: (c, 0)),
                          pl.BlockSpec((cb, 1), lambda c, b, t: (c, 0))],
                out_specs=pl.BlockSpec((None, cb, tn), lambda c, b, t: (b, c, t)),
            ),
            compiler_params=pltpu.CompilerParams(
                dimension_semantics=("parallel", "parallel", "parallel"),
                vmem_limit_bytes=vmem_limit),
            cost_estimate=pl.CostEstimate(
                flops=2 * total, transcendentals=C,
                bytes_accessed=total * (in_item + out_item) + 16 * C),
        )(x3, ch_sum, ch_sq, g_f32.reshape(C, 1), b_f32.reshape(C, 1))
        return y3.reshape(B, C, H, W)

    # Eval mode: fold running stats into per-channel scale/shift (C-length math in
    # the wrapper is negligible), then one fully parallel apply pass.
    rm = (jnp.zeros((C,), jnp.float32) if running_mean is None
          else running_mean.astype(jnp.float32))
    rv = (jnp.ones((C,), jnp.float32) if running_var is None
          else running_var.astype(jnp.float32))
    scale = g_f32 * lax.rsqrt(rv + eps)
    shift = b_f32 - rm * scale

    cb = _choose_cb(C)
    n_cb = C // cb
    tn = _choose_tile_hw(HW, cb, in_item, budget)
    n_hw = HW // tn
    y3 = pl.pallas_call(
        _bn_apply_affine_kernel,
        out_shape=jax.ShapeDtypeStruct((B, C, HW), out_dtype),
        grid_spec=pltpu.PrefetchScalarGridSpec(
            num_scalar_prefetch=0,
            grid=(n_cb, B, n_hw),
            in_specs=[pl.BlockSpec((None, cb, tn), lambda c, b, t: (b, c, t)),
                      pl.BlockSpec((cb, 1), lambda c, b, t: (c, 0)),
                      pl.BlockSpec((cb, 1), lambda c, b, t: (c, 0))],
            out_specs=pl.BlockSpec((None, cb, tn), lambda c, b, t: (b, c, t)),
        ),
        compiler_params=pltpu.CompilerParams(
            dimension_semantics=("parallel", "parallel", "parallel"),
            vmem_limit_bytes=vmem_limit),
        cost_estimate=pl.CostEstimate(
            flops=2 * total, transcendentals=0,
            bytes_accessed=total * (in_item + out_item) + 8 * C),
    )(x3, scale.reshape(C, 1), shift.reshape(C, 1))
    return y3.reshape(B, C, H, W)


# ----------------------------------------------------------------------------
# Pure-JAX references (match PyTorch nn.BatchNorm2d forward semantics)
# ----------------------------------------------------------------------------
def reference_bn_train(x, gamma, beta, eps):
    mean = jnp.mean(x, axis=(0, 2, 3), keepdims=True)
    var = jnp.mean((x - mean) ** 2, axis=(0, 2, 3), keepdims=True)   # biased var
    return ((x - mean) / jnp.sqrt(var + eps)
            * gamma[None, :, None, None] + beta[None, :, None, None])


def reference_bn_eval(x, gamma, beta, rm, rv, eps):
    return ((x - rm[None, :, None, None]) / jnp.sqrt(rv + eps)[None, :, None, None]
            * gamma[None, :, None, None] + beta[None, :, None, None])


if __name__ == "__main__":
    key = jax.random.PRNGKey(0)
    B, C, H, W = 2, 4, 16, 16
    eps = 1e-5

    kx, kg, kb, km, kv = jax.random.split(key, 5)
    x = jax.random.normal(kx, (B, C, H, W), jnp.float32)
    gamma = 1.0 + 0.1 * jax.random.normal(kg, (C,), jnp.float32)
    beta = 0.1 * jax.random.normal(kb, (C,), jnp.float32)
    running_mean = 0.1 * jax.random.normal(km, (C,), jnp.float32)
    running_var = 1.0 + 0.5 * jax.random.uniform(kv, (C,), jnp.float32)

    # 1) Training-mode forward (default fresh-module state) — fused single-read path.
    out_train = jax.block_until_ready(
        batchnorm2d_forward(x, gamma, beta, eps=eps, training=True))
    ref_train = reference_bn_train(x, gamma, beta, eps)
    assert out_train.shape == x.shape
    err1 = jnp.max(jnp.abs(out_train - ref_train))
    assert jnp.allclose(out_train, ref_train, atol=1e-4, rtol=1e-4), f"fused err {err1}"

    # 2) Training-mode forward forced through the tiled two-pass (stats + apply)
    #    path with a tiny budget so HW is split into multiple 128-lane tiles.
    out_train2 = jax.block_until_ready(
        batchnorm2d_forward(x, gamma, beta, eps=eps, training=True,
                            force_two_pass=True, vmem_budget_bytes=16 * 1024))
    err2 = jnp.max(jnp.abs(out_train2 - ref_train))
    assert jnp.allclose(out_train2, ref_train, atol=1e-4, rtol=1e-4), f"tiled err {err2}"

    # 3) Eval-mode forward with explicit running statistics.
    out_eval = jax.block_until_ready(
        batchnorm2d_forward(x, gamma, beta, running_mean, running_var,
                            eps=eps, training=False))
    ref_eval = reference_bn_eval(x, gamma, beta, running_mean, running_var, eps)
    err3 = jnp.max(jnp.abs(out_eval - ref_eval))
    assert jnp.allclose(out_eval, ref_eval, atol=1e-4, rtol=1e-4), f"eval err {err3}"

    print("KERNEL_OK")
</pallas_src>

<mosaic_0001>
module attributes {stable_mosaic.version = 11 : i64} {
  func.func @_bn_fused_train_kernel(%arg0: i32, %arg1: memref<2x4x256xf32, #tpu.memory_space<vmem>>, %arg2: memref<1x4x1xf32, #tpu.memory_space<vmem>>, %arg3: memref<1x4x1xf32, #tpu.memory_space<vmem>>, %arg4: memref<2x4x256xf32, #tpu.memory_space<vmem>>) attributes {dimension_semantics = [#tpu.dimension_semantics<arbitrary>], iteration_bounds = array<i64: 1>, scalar_prefetch = 0 : i64, scratch_operands = 0 : i64, tpu.core_type = #tpu.core_type<tc>, window_params = [{pipeline_mode = #tpu.pipeline_mode<synchronous>, transform_indices = @transform_0, window_bounds = array<i64: 2, 4, 256>}, {pipeline_mode = #tpu.pipeline_mode<synchronous>, transform_indices = @transform_1, window_bounds = array<i64: 1, 4, 1>}, {pipeline_mode = #tpu.pipeline_mode<synchronous>, transform_indices = @transform_2, window_bounds = array<i64: 1, 4, 1>}, {pipeline_mode = #tpu.pipeline_mode<synchronous>, transform_indices = @transform_3, window_bounds = array<i64: 2, 4, 256>}]} {
    %c0 = arith.constant 0 : index
    %c0_0 = arith.constant 0 : index
    %c0_1 = arith.constant 0 : index
    %0 = vector.load %arg1[%c0, %c0_0, %c0_1] : memref<2x4x256xf32, #tpu.memory_space<vmem>>, vector<2x4x256xf32>
    %cst = arith.constant dense<0.000000e+00> : vector<4xf32>
    %1 = vector.multi_reduction <add>, %0, %cst [0, 2] : vector<2x4x256xf32> to vector<4xf32>
    %2 = vector.shape_cast %1 : vector<4xf32> to vector<1x4x1xf32>
    %cst_2 = arith.constant 0.001953125 : f32
    %3 = vector.broadcast %cst_2 : f32 to vector<1x4x1xf32>
    %4 = arith.mulf %2, %3 : vector<1x4x1xf32>
    %5 = vector.broadcast %4 : vector<1x4x1xf32> to vector<2x4x256xf32>
    %6 = arith.subf %0, %5 : vector<2x4x256xf32>
    %7 = arith.mulf %6, %6 : vector<2x4x256xf32>
    %cst_3 = arith.constant dense<0.000000e+00> : vector<4xf32>
    %8 = vector.multi_reduction <add>, %7, %cst_3 [0, 2] : vector<2x4x256xf32> to vector<4xf32>
    %9 = vector.shape_cast %8 : vector<4xf32> to vector<1x4x1xf32>
    %cst_4 = arith.constant 0.001953125 : f32
    %10 = vector.broadcast %cst_4 : f32 to vector<1x4x1xf32>
    %11 = arith.mulf %9, %10 : vector<1x4x1xf32>
    %c0_5 = arith.constant 0 : index
    %c0_6 = arith.constant 0 : index
    %c0_7 = arith.constant 0 : index
    %12 = vector.load %arg2[%c0_5, %c0_6, %c0_7] : memref<1x4x1xf32, #tpu.memory_space<vmem>>, vector<1x4x1xf32>
    %cst_8 = arith.constant 9.99999974E-6 : f32
    %13 = vector.broadcast %cst_8 : f32 to vector<1x4x1xf32>
    %14 = arith.addf %11, %13 : vector<1x4x1xf32>
    %15 = math.rsqrt %14 : vector<1x4x1xf32>
    %16 = arith.mulf %12, %15 : vector<1x4x1xf32>
    %c0_9 = arith.constant 0 : index
    %c0_10 = arith.constant 0 : index
    %c0_11 = arith.constant 0 : index
    %17 = vector.load %arg3[%c0_9, %c0_10, %c0_11] : memref<1x4x1xf32, #tpu.memory_space<vmem>>, vector<1x4x1xf32>
    %18 = arith.mulf %4, %16 : vector<1x4x1xf32>
    %19 = arith.subf %17, %18 : vector<1x4x1xf32>
    %20 = vector.broadcast %16 : vector<1x4x1xf32> to vector<2x4x256xf32>
    %21 = arith.mulf %0, %20 : vector<2x4x256xf32>
    %22 = vector.broadcast %19 : vector<1x4x1xf32> to vector<2x4x256xf32>
    %23 = arith.addf %21, %22 : vector<2x4x256xf32>
    %c0_12 = arith.constant 0 : index
    %c0_13 = arith.constant 0 : index
    %c0_14 = arith.constant 0 : index
    %24 = vector.load %arg4[%c0_12, %c0_13, %c0_14] : memref<2x4x256xf32, #tpu.memory_space<vmem>>, vector<2x4x256xf32>
    tpu.vector_store %arg4[%c0_12, %c0_13, %c0_14], %23 {strides = array<i32>} : memref<2x4x256xf32, #tpu.memory_space<vmem>>, vector<2x4x256xf32>,
    return
  }
  func.func @transform_0(%arg0: i32) -> (i32, i32, i32) {
    %c0_i32 = arith.constant 0 : i32
    %c0_i32_0 = arith.constant 0 : i32
    %c0_i32_1 = arith.constant 0 : i32
    %c0_i32_2 = arith.constant 0 : i32
    return %c0_i32, %c0_i32_0, %c0_i32_1 : i32, i32, i32
  }
  func.func @transform_1(%arg0: i32) -> (i32, i32, i32) {
    %c0_i32 = arith.constant 0 : i32
    %c0_i32_0 = arith.constant 0 : i32
    %c0_i32_1 = arith.constant 0 : i32
    %c0_i32_2 = arith.constant 0 : i32
    return %c0_i32, %c0_i32_0, %c0_i32_1 : i32, i32, i32
  }
  func.func @transform_2(%arg0: i32) -> (i32, i32, i32) {
    %c0_i32 = arith.constant 0 : i32
    %c0_i32_0 = arith.constant 0 : i32
    %c0_i32_1 = arith.constant 0 : i32
    %c0_i32_2 = arith.constant 0 : i32
    return %c0_i32, %c0_i32_0, %c0_i32_1 : i32, i32, i32
  }
  func.func @transform_3(%arg0: i32) -> (i32, i32, i32) {
    %c0_i32 = arith.constant 0 : i32
    %c0_i32_0 = arith.constant 0 : i32
    %c0_i32_1 = arith.constant 0 : i32
    %c0_i32_2 = arith.constant 0 : i32
    return %c0_i32, %c0_i32_0, %c0_i32_1 : i32, i32, i32
  }
}

</mosaic_0001>

<llo_original>
// kernel: tpu_custom_call.1
$region0: #{tpu_custom_call.1}
  #allocation0 [shape = 'u32[]', space=smem, size = 0x4, offset = 0x4, fixed_abs, tag = 'smem constant byte address 0x4 - core index']
  #allocation1 [shape = 'u32[72,128]{1,0:T(1,128)}', space=vmem, size = 0x9000, scoped, tag = 'internal scratch']
  %s0 = inlined_call_operand.hbm [shape: f32[2,4,256], index: 0, kind: input, shape index: {}]
  %s1 = inlined_call_operand.vmem [shape: f32[1,4,1], index: 1, kind: input, shape index: {}]
  %s2 = inlined_call_operand.vmem [shape: f32[1,4,1], index: 2, kind: input, shape index: {}]
  %s3 = inlined_call_operand.hbm [shape: f32[2,4,256], index: 3, kind: output, shape index: {}]
  %s4 = sld [smem:[#allocation0]]
  $region26: #{tpu_custom_call.1} parent=0
    _
  %s6 = ssub.s32 1, %s4
  %s7 = scalar_select 0, %s6, %s4
  $region1: #{tpu_custom_call.1} parent=0
    #allocation2 [shape = 'u8[8192]{0}', space=vmem, size = 0x2000, scoped, tag = 'input window, operand 0, single buffered']
    #allocation3 [shape = 's32[1]{0}', space=sflag, size = 0x4, scoped, tag = 'scoped memory for tpu_custom_call.1']
    #allocation4 [shape = 's32[1]{0}', space=sflag, size = 0x4, scoped, tag = 'scoped memory for tpu_custom_call.1']
    #allocation5 [shape = 'u8[8192]{0}', space=vmem, size = 0x2000, scoped, tag = 'output window, operand 0, single buffered']
    %8 = vsyncpa [#allocation3], 0
    %9 = vsyncpa [#allocation4], 0
    // Predicated region
    $region2: #{tpu_custom_call.1} parent=1 // pred_check
      _
    $region3: #{tpu_custom_call.1} parent=1 // pred_check_branch
      %11 = sbr.rel (0) target = $region5
    $region4: #{tpu_custom_call.1} parent=1 // pred_region
      %13 = vsyncadd [#allocation3], 0
      %s14 = sshll.u32 %s0, 4
      %s15 = int_to_ptr.hbm [resolvable:$true] %s14
      %s16 = sshll.u32 [#allocation2], 4
      %s17 = int_to_ptr.vmem [resolvable:$true] %s16
      %22 = dma.hbm_to_vmem [thread:$0]  %s15, 256, %s17, [#allocation3], 128, 128, 8
    $region5: #{tpu_custom_call.1} parent=1 // pred_fallthru
      _
    // Predicated region
    $region6: #{tpu_custom_call.1} parent=1 // pred_check
      _
    $region7: #{tpu_custom_call.1} parent=1 // pred_check_branch
      %24 = sbr.rel (0) target = $region9
    $region8: #{tpu_custom_call.1} parent=1 // pred_region
      _
    $region9: #{tpu_custom_call.1} parent=1 // pred_fallthru
      _
    // Predicated region
    $region10: #{tpu_custom_call.1} parent=1 // pred_check
      _
    $region11: #{tpu_custom_call.1} parent=1 // pred_check_branch
      %26 = sbr.rel (0) target = $region13
    $region12: #{tpu_custom_call.1} parent=1 // pred_region
      _
    $region13: #{tpu_custom_call.1} parent=1 // pred_fallthru
      _
    // Predicated region
    $region14: #{tpu_custom_call.1} parent=1 // pred_check
      _
    $region15: #{tpu_custom_call.1} parent=1 // pred_check_branch
      %28 = sbr.rel (0) target = $region17
    $region16: #{tpu_custom_call.1} parent=1 // pred_region
      %30 = dma.done [#allocation3], 256
    $region17: #{tpu_custom_call.1} parent=1 // pred_fallthru
      _
    %v31 = vld [vmem:[#allocation2] sm:$0xff]
    %v32 = vld [vmem:[#allocation2 + $0x8] sm:$0xff]
    %35 = vst [vmem:[#allocation1] ss:$2 sm:$0xff] %v31
    %v36 = vld.sshfl [vmem:[#allocation1] sm:$0xff pattern:$0x75316420]
    %v37 = vld.sshfl [vmem:[#allocation1 + $0x8] sm:$0xff pattern:$0x75316420]
    %s38 = scalar_lea.vmem [#allocation1], 16
    %39 = vst [vmem:[%s38] ss:$2 sm:$0xff] %v32
    %v40 = vld.sshfl [vmem:[#allocation1 + $0x10] sm:$0xff pattern:$0x75316420]
    %v41 = vld.sshfl [vmem:[#allocation1 + $0x18] sm:$0xff pattern:$0x75316420]
    %vm46 = vcmask 1043456
    %v47 = vsel %vm46, %v36, 0.0
    %v48 = vsel %vm46, %v37, 0.0
    %v49 = vadd.f32 %v47, %v48
    %v50 = vsel %vm46, %v40, 0.0
    %v51 = vadd.f32 %v49, %v50
    %v52 = vsel %vm46, %v41, 0.0
    %v53 = vadd.f32 %v51, %v52
    %54 = vadd.xlane.f32.xlu0 %v53
    %v55 = vpop.xlane.xlu0 %54
    %v56 = vmul.f32 %v55, 0.001953125
    %v59 = vunpack.c.l.s4 839922192
    %v60 = vunpack.c.0.s8 %v59
    %v61 = vperm.slane %v56, %v60
    %v63 = vsub.f32 %v31, %v61
    %v64 = vsub.f32 %v32, %v61
    %v65 = vmul.f32 %v63, %v63
    %v66 = vmul.f32 %v64, %v64
    %69 = vst [vmem:[#allocation1] ss:$2 sm:$0xff] %v65
    %v70 = vld.sshfl [vmem:[#allocation1] sm:$0xff pattern:$0x75316420]
    %v71 = vld.sshfl [vmem:[#allocation1 + $0x8] sm:$0xff pattern:$0x75316420]
    %s72 = scalar_lea.vmem [#allocation1], 16
    %73 = vst [vmem:[%s72] ss:$2 sm:$0xff] %v66
    %v74 = vld.sshfl [vmem:[#allocation1 + $0x10] sm:$0xff pattern:$0x75316420]
    %v75 = vld.sshfl [vmem:[#allocation1 + $0x18] sm:$0xff pattern:$0x75316420]
    %v80 = vsel %vm46, %v70, 0.0
    %v81 = vsel %vm46, %v71, 0.0
    %v82 = vadd.f32 %v80, %v81
    %v83 = vsel %vm46, %v74, 0.0
    %v84 = vadd.f32 %v82, %v83
    %v85 = vsel %vm46, %v75, 0.0
    %v86 = vadd.f32 %v84, %v85
    %87 = vadd.xlane.f32.xlu0 %v86
    %v88 = vpop.xlane.xlu0 %87
    %v89 = vmul.f32 %v88, 0.001953125
    %v90 = vld [vmem:[%s1] sm:$0xf]
    %v91 = vadd.f32 %v89, 1e-05
    %v92 = vrsqrt.pop %v91
    %v93 = vmul.f32 %v92, %v91
    %v94 = vmul.f32 %v93, %v92
    %v95 = vmul.f32 0.5, %v94
    %v96 = vsub.f32 1.5, %v95
    %v97 = vmul.f32 %v92, %v96
    %vm98 = vweird.f32 %v91
    %vm99 = vweird.f32 %v92
    %vm100 = vmor %vm98, %vm99
    %v101 = vsel %vm100, %v92, %v97
    %v102 = vmul.f32 %v90, %v101
    %v103 = vld [vmem:[%s2] sm:$0xf]
    %v104 = vmul.f32 %v56, %v102
    %v105 = vsub.f32 %v103, %v104
    %107 = vset.pattern.permute.xlu0 0
    %108 = vperm.xlu0 %107, %v102
    %v109 = vpop.permute.xlu0 %108
    %v111 = vunpack.c.l.s4 839922192
    %v112 = vunpack.c.0.s8 %v111
    %v113 = vperm.slane %v109, %v112
    %v115 = vmul.f32 %v31, %v113
    %v116 = vmul.f32 %v32, %v113
    %118 = vset.pattern.permute.xlu0 0
    %119 = vperm.xlu0 %118, %v105
    %v120 = vpop.permute.xlu0 %119
    %v122 = vunpack.c.l.s4 839922192
    %v123 = vunpack.c.0.s8 %v122
    %v124 = vperm.slane %v120, %v123
    %v126 = vadd.f32 %v115, %v124
    %v127 = vadd.f32 %v116, %v124
    %128 = vst [vmem:[#allocation5] sm:$0xff] %v126
    %129 = vst [vmem:[#allocation5 + $0x8] sm:$0xff] %v127
    // Predicated region
    $region18: #{tpu_custom_call.1} parent=1 // pred_check
      _
    $region19: #{tpu_custom_call.1} parent=1 // pred_check_branch
      %131 = sbr.rel (0) target = $region21
    $region20: #{tpu_custom_call.1} parent=1 // pred_region
      %133 = vsyncadd [#allocation4], 0
      %s134 = sshll.u32 [#allocation5], 4
      %s135 = int_to_ptr.vmem [resolvable:$true] %s134
      %s136 = sshll.u32 %s3, 4
      %s137 = int_to_ptr.hbm [resolvable:$true] %s136
      %142 = dma.vmem_to_hbm [thread:$0]  %s135, 256, %s137, [#allocation4], 128, 128, 8
    $region21: #{tpu_custom_call.1} parent=1 // pred_fallthru
      _
    // Predicated region
    $region22: #{tpu_custom_call.1} parent=1 // pred_check
      _
    $region23: #{tpu_custom_call.1} parent=1 // pred_check_branch
      %144 = sbr.rel (0) target = $region25
    $region24: #{tpu_custom_call.1} parent=1 // pred_region
      %146 = dma.done [#allocation4], 256
    $region25: #{tpu_custom_call.1} parent=1 // pred_fallthru
      _
    %147 = vsyncpa [#allocation3], 1
    %148 = vsyncpa [#allocation4], 1

</llo_original>
